<compile_context>
chip_gen: v7x
topology: tpu7x:2x2x1
jax: 0.10.0
libtpu: 0.0.40
codegen_flags: <defaults>
</compile_context>

<pallas_src>
import numpy as np

import jax
import jax.numpy as jnp
from jax.experimental import pallas as pl
from jax.experimental.pallas import tpu as pltpu


# ----------------------------------------------------------------------------
# Host-side (trace-time) constant construction
# ----------------------------------------------------------------------------
def _bilinear_matrix(out_size: int, in_size: int) -> np.ndarray:
    """[out_size, in_size] interpolation matrix matching
    F.interpolate(mode='bilinear', align_corners=False) along one axis.
    Rows sum to 1 (row-stochastic), so a constant bias commutes through it.
    Pure numpy -> baked as a constant at trace time (no runtime ops)."""
    o = np.arange(out_size, dtype=np.float32)
    src = (o + 0.5) * (in_size / out_size) - 0.5
    src = np.maximum(src, 0.0)                      # PyTorch clamps negative src
    i0 = np.minimum(np.floor(src).astype(np.int32), in_size - 1)
    i1 = np.minimum(i0 + 1, in_size - 1)
    w1 = (src - i0).astype(np.float32)
    w0 = (1.0 - w1).astype(np.float32)
    m = np.zeros((out_size, in_size), dtype=np.float32)
    rows = np.arange(out_size)
    m[rows, i0] += w0
    m[rows, i1] += w1
    return m


def _num_tensorcores() -> int:
    """2 TensorCores per chip on v7x (and megacore v4/v5p); 1 on v5e/v6e."""
    try:
        kind = jax.devices()[0].device_kind.lower()
    except Exception:
        return 1
    if "v7" in kind:
        return 2
    if "v4" in kind or "v5p" in kind or "v5 p" in kind:
        return 2
    return 1


def _round_up(x: int, m: int) -> int:
    return -(-x // m) * m


def _vmem_bytes(bB, H, WC, outH, outW, esize) -> int:
    """Rough per-step VMEM footprint (double-buffered blocks, lane/sublane pad)."""
    def tile(r, c, es):
        return _round_up(r, 8) * _round_up(c, 128) * es
    t_blk = 2 * tile(bB * H, WC, esize)          # tokens block (double-buffered)
    o_blk = 2 * tile(bB * outH, outW, 4)         # f32 output block
    kx_b = 2 * tile(WC, outW, esize)             # fused conv + x-resize matrix
    ry_b = 2 * tile(bB * outH, bB * H, esize)    # block-diag y-resize matrix
    return t_blk + o_blk + kx_b + ry_b


def _pick_block_batch(B, H, WC, outH, outW, num_tc, esize,
                      vmem_budget=24 * 2**20) -> int:
    """Batch elements folded per grid step.
      * keep >= num_tc grid steps when B allows (only matters on 2-TC chips),
      * fill the MXU M dimension (bB*H >= 256) and reach ~0.5 MiB input blocks,
      * stay inside the VMEM budget (v7x: 64 MiB physical / 32 MiB scoped default).
    """
    divisors = [d for d in range(1, B + 1) if B % d == 0]
    cand = [d for d in divisors if B // d >= num_tc] or divisors
    cand = ([d for d in cand
             if _vmem_bytes(d, H, WC, outH, outW, esize) <= vmem_budget]
            or [min(cand)])
    fill_m = [d for d in cand if d * H >= 256]
    if fill_m:
        big = [d for d in fill_m if d * H * WC * esize >= 512 * 1024]
        return min(big) if big else max(fill_m)
    return max(cand)


# ----------------------------------------------------------------------------
# Kernel
# ----------------------------------------------------------------------------
def _mask_head_kernel(t_ref, kx_ref, ryb_ref, b_ref, out_ref):
    # t_ref:   (1, bB*H, W*C)      tokens for bB batch elements (compute dtype)
    # kx_ref:  (W*C, outW)         fused 1x1-conv + x-resize matrix
    # ryb_ref: (bB*outH, bB*H)     block-diagonal y-resize matrix kron(I_bB, Ry)
    # b_ref:   (1, 1)              conv bias, f32 (SMEM scalar)
    # out_ref: (1, bB*outH, outW)  f32, sublane-stacked per batch element
    t = t_ref[0]                                                      # (bB*H, W*C)

    # Matmul 1: fused 1x1 conv + x-resize, lane-dense contraction K = W*C.
    tmp = jnp.dot(t, kx_ref[...],
                  preferred_element_type=jnp.float32)                 # (bB*H, outW)

    # Matmul 2: y-resize of all folded batch elements in ONE matmul against the
    # block-diagonal Ry (K = bB*H fills the MXU depth; no per-b loop/concat).
    tmp = tmp.astype(ryb_ref.dtype)                                   # bf16 for MXU
    out = jnp.dot(ryb_ref[...], tmp,
                  preferred_element_type=jnp.float32)                 # (bB*outH, outW)

    # Bias added once at the end (both resize matrices are row-stochastic).
    out_ref[0] = out + b_ref[0, 0]


# ----------------------------------------------------------------------------
# Wrapper
# ----------------------------------------------------------------------------
def attention_decoder_mask_head(tokens, feat_size, conv_w, conv_b,
                                output_resolution=(64, 64),
                                block_batch=None,
                                compute_dtype=jnp.bfloat16):
    """tokens: (B, H*W, C); conv_w: (1, C, 1, 1); conv_b: (1,).
    Returns (B, 1, outH, outW) float32, matching the PyTorch forward."""
    B, N, C = tokens.shape
    H, W = feat_size
    outH, outW = output_resolution
    assert N == H * W
    WC = W * C
    esize = np.dtype(compute_dtype).itemsize

    num_tc = _num_tensorcores()
    bB = (block_batch if block_batch is not None
          else _pick_block_batch(B, H, WC, outH, outW, num_tc, esize))
    assert B % bB == 0 and bB >= 1
    nb = B // bB

    # Shape-only constants, built on the host (baked at trace time).
    rx = _bilinear_matrix(outW, W)                                    # (outW, W) f32
    ry = _bilinear_matrix(outH, H)                                    # (outH, H) f32
    ry_big = np.kron(np.eye(bB, dtype=np.float32), ry)                # (bB*outH, bB*H)
    ry_big = jnp.asarray(ry_big, dtype=compute_dtype)

    # Fused conv + x-resize operand: Kx[(w*C + c), x] = Rx[x, w] * conv_w[c].
    # Tiny traced prep (depends on conv_w); fuses away under jit.
    w = conv_w.reshape(C).astype(jnp.float32)
    kx = (jnp.asarray(rx)[:, :, None] * w[None, None, :]).reshape(outW, WC).T
    kx = kx.astype(compute_dtype)                                     # (WC, outW)
    bias = conv_b.reshape(1, 1).astype(jnp.float32)

    # Free row-major view + bf16 cast: (B, H*W, C) -> (nb, bB*H, W*C).
    t3 = tokens.reshape(nb, bB * H, WC).astype(compute_dtype)

    est = _vmem_bytes(bB, H, WC, outH, outW, esize)
    vmem_limit = int(min(64 * 2**20, max(2 * est, 32 * 2**20)))       # safe on v7x

    out_slab = pl.pallas_call(
        _mask_head_kernel,
        out_shape=jax.ShapeDtypeStruct((nb, bB * outH, outW), jnp.float32),
        grid_spec=pltpu.PrefetchScalarGridSpec(
            num_scalar_prefetch=0,
            grid=(nb,),
            in_specs=[
                pl.BlockSpec((1, bB * H, WC), lambda i: (i, 0, 0)),
                pl.BlockSpec((WC, outW), lambda i: (0, 0)),
                pl.BlockSpec((bB * outH, bB * H), lambda i: (0, 0)),
                pl.BlockSpec(memory_space=pltpu.MemorySpace.SMEM),
            ],
            out_specs=pl.BlockSpec((1, bB * outH, outW), lambda i: (i, 0, 0)),
        ),
        compiler_params=pltpu.CompilerParams(
            dimension_semantics=("parallel",),
            vmem_limit_bytes=vmem_limit),
    )(t3, kx, ry_big, bias)

    # Sublane-stacked slab -> (B, 1, outH, outW) is a PURE reshape (no transpose,
    # no extra HBM pass): rows are already ordered (batch, outH).
    return out_slab.reshape(B, 1, outH, outW)


# ----------------------------------------------------------------------------
# Pure-JAX references (PyTorch forward semantics)
# ----------------------------------------------------------------------------
def _reference(tokens, feat_size, conv_w, conv_b, output_resolution):
    """Un-fused conv + separable interpolation matrices (exact f32 math)."""
    B, N, C = tokens.shape
    H, W = feat_size
    grid = jnp.transpose(tokens, (0, 2, 1)).reshape(B, C, H, W)          # NCHW
    m = jnp.einsum('bchw,c->bhw', grid, conv_w.reshape(C)) + conv_b[0]   # (B,H,W)
    ry = jnp.asarray(_bilinear_matrix(output_resolution[0], H))
    rx = jnp.asarray(_bilinear_matrix(output_resolution[1], W))
    out = jnp.einsum('oh,bhw,pw->bop', ry, m, rx)
    return out[:, None, :, :]


if __name__ == "__main__":
    # Small shapes consistent with the module: token_dim=32, feat 16x16, out 64x64.
    B, H, W, C = 4, 16, 16, 32
    out_res = (64, 64)

    key = jax.random.PRNGKey(0)
    k1, k2, k3 = jax.random.split(key, 3)
    tokens = jax.random.normal(k1, (B, H * W, C), dtype=jnp.float32)
    conv_w = jax.random.normal(k2, (1, C, 1, 1), dtype=jnp.float32) * 0.1
    conv_b = jax.random.normal(k3, (1,), dtype=jnp.float32) * 0.1

    fwd = jax.jit(attention_decoder_mask_head,
                  static_argnames=("feat_size", "output_resolution",
                                   "block_batch", "compute_dtype"))

    # ---- exact-math path (f32 operands) vs un-fused matrix reference ----
    out_f32 = jax.block_until_ready(
        fwd(tokens, feat_size=(H, W), conv_w=conv_w, conv_b=conv_b,
            output_resolution=out_res, compute_dtype=jnp.float32))
    assert out_f32.shape == (B, 1, out_res[0], out_res[1]), out_f32.shape
    ref = _reference(tokens, (H, W), conv_w, conv_b, out_res)
    assert jnp.allclose(out_f32, ref, atol=1e-4, rtol=1e-4), \
        "f32 kernel mismatch vs matrix reference"

    # ---- independent interpolation semantics (upsampling only):
    #      jax.image.resize('bilinear') == F.interpolate(align_corners=False) ----
    m = (jnp.einsum('bnc,c->bn', tokens, conv_w.reshape(C)).reshape(B, 1, H, W)
         + conv_b[0])
    ref2 = jax.image.resize(m, (B, 1, out_res[0], out_res[1]), method='bilinear')
    assert jnp.allclose(out_f32, ref2, atol=1e-2), "mismatch vs jax.image.resize"

    # ---- production bf16-MXU path (default) with loosened tolerance ----
    out_bf16 = jax.block_until_ready(
        fwd(tokens, feat_size=(H, W), conv_w=conv_w, conv_b=conv_b,
            output_resolution=out_res))
    assert out_bf16.shape == (B, 1, out_res[0], out_res[1])
    assert jnp.allclose(out_bf16, ref, atol=2.5e-2, rtol=2.5e-2), \
        "bf16 kernel mismatch vs reference"

    # ---- multi-step grid path (nb > 1) to exercise the block-diag folding ----
    B2 = 8
    tokens2 = jax.random.normal(jax.random.PRNGKey(1), (B2, H * W, C),
                                dtype=jnp.float32)
    out2 = jax.block_until_ready(
        fwd(tokens2, feat_size=(H, W), conv_w=conv_w, conv_b=conv_b,
            output_resolution=out_res, block_batch=2))
    ref3 = _reference(tokens2, (H, W), conv_w, conv_b, out_res)
    assert out2.shape == (B2, 1, out_res[0], out_res[1])
    assert jnp.allclose(out2, ref3, atol=2.5e-2, rtol=2.5e-2), \
        "multi-step grid mismatch vs reference"

    print("KERNEL_OK")
</pallas_src>

<mosaic_0001>
module attributes {stable_mosaic.version = 11 : i64} {
  func.func @_mask_head_kernel(%arg0: i32, %arg1: memref<1x64x512xf32, #tpu.memory_space<vmem>>, %arg2: memref<512x64xf32, #tpu.memory_space<vmem>>, %arg3: memref<256x64xf32, #tpu.memory_space<vmem>>, %arg4: memref<1x1xf32, #tpu.memory_space<smem>>, %arg5: memref<1x256x64xf32, #tpu.memory_space<vmem>>) attributes {dimension_semantics = [#tpu.dimension_semantics<parallel>], iteration_bounds = array<i64: 1>, scalar_prefetch = 0 : i64, scratch_operands = 0 : i64, tpu.core_type = #tpu.core_type<tc>, window_params = [{transform_indices = @transform_0, window_bounds = array<i64: 1, 64, 512>}, {pipeline_mode = #tpu.pipeline_mode<synchronous>, transform_indices = @transform_1, window_bounds = array<i64: 512, 64>}, {pipeline_mode = #tpu.pipeline_mode<synchronous>, transform_indices = @transform_2, window_bounds = array<i64: 256, 64>}, {transform_indices = @transform_3, window_bounds = array<i64: 1, 1>}, {transform_indices = @transform_4, window_bounds = array<i64: 1, 256, 64>}]} {
    %c0 = arith.constant 0 : index
    %c0_0 = arith.constant 0 : index
    %c0_1 = arith.constant 0 : index
    %0 = vector.load %arg1[%c0, %c0_0, %c0_1] : memref<1x64x512xf32, #tpu.memory_space<vmem>>, vector<1x64x512xf32>
    %1 = vector.shape_cast %0 : vector<1x64x512xf32> to vector<64x512xf32>
    %c0_2 = arith.constant 0 : index
    %c0_3 = arith.constant 0 : index
    %2 = vector.load %arg2[%c0_2, %c0_3] : memref<512x64xf32, #tpu.memory_space<vmem>>, vector<512x64xf32>
    %cst = arith.constant dense<0.000000e+00> : vector<64x64xf32>
    %3 = tpu.matmul %1, %2, %cst {dimension_numbers = #tpu.dot_dimension_numbers<[1], [0], [0], [1], [0, 0, 1, 1], [], []>} : vector<64x512xf32>, vector<512x64xf32>, vector<64x64xf32> -> vector<64x64xf32>
    %c0_4 = arith.constant 0 : index
    %c0_5 = arith.constant 0 : index
    %4 = vector.load %arg3[%c0_4, %c0_5] : memref<256x64xf32, #tpu.memory_space<vmem>>, vector<256x64xf32>
    %cst_6 = arith.constant dense<0.000000e+00> : vector<256x64xf32>
    %5 = tpu.matmul %4, %3, %cst_6 {dimension_numbers = #tpu.dot_dimension_numbers<[1], [0], [0], [1], [0, 0, 1, 1], [], []>} : vector<256x64xf32>, vector<64x64xf32>, vector<256x64xf32> -> vector<256x64xf32>
    %c0_7 = arith.constant 0 : index
    %c0_8 = arith.constant 0 : index
    %6 = memref.load %arg4[%c0_7, %c0_8] : memref<1x1xf32, #tpu.memory_space<smem>>
    %7 = vector.broadcast %6 : f32 to vector<256x64xf32>
    %8 = arith.addf %5, %7 : vector<256x64xf32>
    %c0_9 = arith.constant 0 : index
    %c0_10 = arith.constant 0 : index
    %c0_11 = arith.constant 0 : index
    %9 = vector.load %arg5[%c0_9, %c0_10, %c0_11] : memref<1x256x64xf32, #tpu.memory_space<vmem>>, vector<1x256x64xf32>
    %10 = vector.shape_cast %9 : vector<1x256x64xf32> to vector<256x64xf32>
    %11 = vector.shape_cast %8 : vector<256x64xf32> to vector<1x256x64xf32>
    tpu.vector_store %arg5[%c0_9, %c0_10, %c0_11], %11 {strides = array<i32>} : memref<1x256x64xf32, #tpu.memory_space<vmem>>, vector<1x256x64xf32>,
    return
  }
  func.func @transform_0(%arg0: i32) -> (i32, i32, i32) {
    %c0_i32 = arith.constant 0 : i32
    %c0_i32_0 = arith.constant 0 : i32
    %c0_i32_1 = arith.constant 0 : i32
    return %arg0, %c0_i32, %c0_i32_0 : i32, i32, i32
  }
  func.func @transform_1(%arg0: i32) -> (i32, i32) {
    %c0_i32 = arith.constant 0 : i32
    %c0_i32_0 = arith.constant 0 : i32
    %c0_i32_1 = arith.constant 0 : i32
    return %c0_i32, %c0_i32_0 : i32, i32
  }
  func.func @transform_2(%arg0: i32) -> (i32, i32) {
    %c0_i32 = arith.constant 0 : i32
    %c0_i32_0 = arith.constant 0 : i32
    %c0_i32_1 = arith.constant 0 : i32
    return %c0_i32, %c0_i32_0 : i32, i32
  }
  func.func @transform_3(%arg0: i32) -> (i32, i32) {
    %c0_i32 = arith.constant 0 : i32
    %c0_i32_0 = arith.constant 0 : i32
    %c0_i32_1 = arith.constant 0 : i32
    return %c0_i32, %c0_i32_0 : i32, i32
  }
  func.func @transform_4(%arg0: i32) -> (i32, i32, i32) {
    %c0_i32 = arith.constant 0 : i32
    %c0_i32_0 = arith.constant 0 : i32
    %c0_i32_1 = arith.constant 0 : i32
    return %arg0, %c0_i32, %c0_i32_0 : i32, i32, i32
  }
}

</mosaic_0001>

<llo_original>
// kernel: attention_decoder_mask_head.1
$region0: #{attention_decoder_mask_head.1}
  #allocation0 [shape = 'u32[]', space=smem, size = 0x4, offset = 0x4, fixed_abs, tag = 'smem constant byte address 0x4 - core index']
  #allocation1 [shape = 'u32[144,128]{1,0:T(1,128)}', space=vmem, size = 0x12000, scoped, tag = 'internal scratch']
  #allocation2 [shape = 'f32[1,1]{1,0:T(1,128)S(6)}', space=smem, size = 0x200, scoped, tag = 'scoped memory for attention_decoder_mask_head.1']
  %s0 = inlined_call_operand.vmem [shape: f32[1,64,512], index: 0, kind: input, shape index: {}]
  %s1 = inlined_call_operand.vmem [shape: f32[512,64], index: 1, kind: input, shape index: {}]
  %s2 = inlined_call_operand.vmem [shape: f32[256,64], index: 2, kind: input, shape index: {}]
  %s3 = inlined_call_operand.<no memory space> [shape: f32[1,1], index: 3, kind: input, shape index: {}]
  %s4 = inlined_call_operand.hbm [shape: f32[1,256,64], index: 4, kind: output, shape index: {}]
  %s5 = sld [smem:[#allocation0]]
  $region26: #{attention_decoder_mask_head.1} parent=0
    _
  %s7 = ssub.s32 1, %s5
  %s8 = scalar_select 0, %s7, %s5
  %9 = sst [smem:[#allocation2]] %s3
  $region1: #{attention_decoder_mask_head.1} parent=0
    #allocation3 [shape = 'u8[131072]{0}', space=vmem, size = 0x20000, scoped, tag = 'output window, operand 0, single buffered']
    #allocation4 [shape = 's32[1]{0}', space=sflag, size = 0x4, scoped, tag = 'scoped memory for attention_decoder_mask_head.1']
    %10 = vsyncpa [#allocation4], 0
    // Predicated region
    $region2: #{attention_decoder_mask_head.1} parent=1 // pred_check
      _
    $region3: #{attention_decoder_mask_head.1} parent=1 // pred_check_branch
      %12 = sbr.rel (0) target = $region5
    $region4: #{attention_decoder_mask_head.1} parent=1 // pred_region
      _
    $region5: #{attention_decoder_mask_head.1} parent=1 // pred_fallthru
      _
    // Predicated region
    $region6: #{attention_decoder_mask_head.1} parent=1 // pred_check
      _
    $region7: #{attention_decoder_mask_head.1} parent=1 // pred_check_branch
      %14 = sbr.rel (0) target = $region9
    $region8: #{attention_decoder_mask_head.1} parent=1 // pred_region
      _
    $region9: #{attention_decoder_mask_head.1} parent=1 // pred_fallthru
      _
    // Predicated region
    $region10: #{attention_decoder_mask_head.1} parent=1 // pred_check
      _
    $region11: #{attention_decoder_mask_head.1} parent=1 // pred_check_branch
      %16 = sbr.rel (0) target = $region13
    $region12: #{attention_decoder_mask_head.1} parent=1 // pred_region
      _
    $region13: #{attention_decoder_mask_head.1} parent=1 // pred_fallthru
      _
    // Predicated region
    $region14: #{attention_decoder_mask_head.1} parent=1 // pred_check
      _
    $region15: #{attention_decoder_mask_head.1} parent=1 // pred_check_branch
      %18 = sbr.rel (0) target = $region17
    $region16: #{attention_decoder_mask_head.1} parent=1 // pred_region
      _
    $region17: #{attention_decoder_mask_head.1} parent=1 // pred_fallthru
      _
    %v19 = vld [vmem:[%s0] sm:$0xff]
    %v20 = vld [vmem:[%s0 + $0x8] sm:$0xff]
    %v21 = vld [vmem:[%s0 + $0x10] sm:$0xff]
    %v22 = vld [vmem:[%s0 + $0x18] sm:$0xff]
    %v23 = vld [vmem:[%s0 + $0x20] sm:$0xff]
    %v24 = vld [vmem:[%s0 + $0x28] sm:$0xff]
    %v25 = vld [vmem:[%s0 + $0x30] sm:$0xff]
    %v26 = vld [vmem:[%s0 + $0x38] sm:$0xff]
    %v27 = vld [vmem:[%s0 + $0x40] sm:$0xff]
    %v28 = vld [vmem:[%s0 + $0x48] sm:$0xff]
    %v29 = vld [vmem:[%s0 + $0x50] sm:$0xff]
    %v30 = vld [vmem:[%s0 + $0x58] sm:$0xff]
    %v31 = vld [vmem:[%s0 + $0x60] sm:$0xff]
    %v32 = vld [vmem:[%s0 + $0x68] sm:$0xff]
    %v33 = vld [vmem:[%s0 + $0x70] sm:$0xff]
    %v34 = vld [vmem:[%s0 + $0x78] sm:$0xff]
    %v35 = vld [vmem:[%s0 + $0x80] sm:$0xff]
    %v36 = vld [vmem:[%s0 + $0x88] sm:$0xff]
    %v37 = vld [vmem:[%s0 + $0x90] sm:$0xff]
    %v38 = vld [vmem:[%s0 + $0x98] sm:$0xff]
    %v39 = vld [vmem:[%s0 + $0xa0] sm:$0xff]
    %v40 = vld [vmem:[%s0 + $0xa8] sm:$0xff]
    %v41 = vld [vmem:[%s0 + $0xb0] sm:$0xff]
    %v42 = vld [vmem:[%s0 + $0xb8] sm:$0xff]
    %v43 = vld [vmem:[%s0 + $0xc0] sm:$0xff]
    %v44 = vld [vmem:[%s0 + $0xc8] sm:$0xff]
    %v45 = vld [vmem:[%s0 + $0xd0] sm:$0xff]
    %v46 = vld [vmem:[%s0 + $0xd8] sm:$0xff]
    %v47 = vld [vmem:[%s0 + $0xe0] sm:$0xff]
    %v48 = vld [vmem:[%s0 + $0xe8] sm:$0xff]
    %v49 = vld [vmem:[%s0 + $0xf0] sm:$0xff]
    %v50 = vld [vmem:[%s0 + $0xf8] sm:$0xff]
    %v51 = vld [vmem:[%s1] sm:$0xff]
    %v52 = vld [vmem:[%s1 + $0x8] sm:$0xff]
    %v53 = vld [vmem:[%s1 + $0x10] sm:$0xff]
    %v54 = vld [vmem:[%s1 + $0x18] sm:$0xff]
    %v55 = vld [vmem:[%s1 + $0x20] sm:$0xff]
    %v56 = vld [vmem:[%s1 + $0x28] sm:$0xff]
    %v57 = vld [vmem:[%s1 + $0x30] sm:$0xff]
    %v58 = vld [vmem:[%s1 + $0x38] sm:$0xff]
    %v59 = vld [vmem:[%s1 + $0x40] sm:$0xff]
    %v60 = vld [vmem:[%s1 + $0x48] sm:$0xff]
    %v61 = vld [vmem:[%s1 + $0x50] sm:$0xff]
    %v62 = vld [vmem:[%s1 + $0x58] sm:$0xff]
    %v63 = vld [vmem:[%s1 + $0x60] sm:$0xff]
    %v64 = vld [vmem:[%s1 + $0x68] sm:$0xff]
    %v65 = vld [vmem:[%s1 + $0x70] sm:$0xff]
    %v66 = vld [vmem:[%s1 + $0x78] sm:$0xff]
    %v67 = vld [vmem:[%s1 + $0x80] sm:$0xff]
    %v68 = vld [vmem:[%s1 + $0x88] sm:$0xff]
    %v69 = vld [vmem:[%s1 + $0x90] sm:$0xff]
    %v70 = vld [vmem:[%s1 + $0x98] sm:$0xff]
    %v71 = vld [vmem:[%s1 + $0xa0] sm:$0xff]
    %v72 = vld [vmem:[%s1 + $0xa8] sm:$0xff]
    %v73 = vld [vmem:[%s1 + $0xb0] sm:$0xff]
    %v74 = vld [vmem:[%s1 + $0xb8] sm:$0xff]
    %v75 = vld [vmem:[%s1 + $0xc0] sm:$0xff]
    %v76 = vld [vmem:[%s1 + $0xc8] sm:$0xff]
    %v77 = vld [vmem:[%s1 + $0xd0] sm:$0xff]
    %v78 = vld [vmem:[%s1 + $0xd8] sm:$0xff]
    %v79 = vld [vmem:[%s1 + $0xe0] sm:$0xff]
    %v80 = vld [vmem:[%s1 + $0xe8] sm:$0xff]
    %v81 = vld [vmem:[%s1 + $0xf0] sm:$0xff]
    %v82 = vld [vmem:[%s1 + $0xf8] sm:$0xff]
    %v83 = vld [vmem:[%s1 + $0x100] sm:$0xff]
    %v84 = vld [vmem:[%s1 + $0x108] sm:$0xff]
    %v85 = vld [vmem:[%s1 + $0x110] sm:$0xff]
    %v86 = vld [vmem:[%s1 + $0x118] sm:$0xff]
    %v87 = vld [vmem:[%s1 + $0x120] sm:$0xff]
    %v88 = vld [vmem:[%s1 + $0x128] sm:$0xff]
    %v89 = vld [vmem:[%s1 + $0x130] sm:$0xff]
    %v90 = vld [vmem:[%s1 + $0x138] sm:$0xff]
    %v91 = vld [vmem:[%s1 + $0x140] sm:$0xff]
    %v92 = vld [vmem:[%s1 + $0x148] sm:$0xff]
    %v93 = vld [vmem:[%s1 + $0x150] sm:$0xff]
    %v94 = vld [vmem:[%s1 + $0x158] sm:$0xff]
    %v95 = vld [vmem:[%s1 + $0x160] sm:$0xff]
    %v96 = vld [vmem:[%s1 + $0x168] sm:$0xff]
    %v97 = vld [vmem:[%s1 + $0x170] sm:$0xff]
    %v98 = vld [vmem:[%s1 + $0x178] sm:$0xff]
    %v99 = vld [vmem:[%s1 + $0x180] sm:$0xff]
    %v100 = vld [vmem:[%s1 + $0x188] sm:$0xff]
    %v101 = vld [vmem:[%s1 + $0x190] sm:$0xff]
    %v102 = vld [vmem:[%s1 + $0x198] sm:$0xff]
    %v103 = vld [vmem:[%s1 + $0x1a0] sm:$0xff]
    %v104 = vld [vmem:[%s1 + $0x1a8] sm:$0xff]
    %v105 = vld [vmem:[%s1 + $0x1b0] sm:$0xff]
    %v106 = vld [vmem:[%s1 + $0x1b8] sm:$0xff]
    %v107 = vld [vmem:[%s1 + $0x1c0] sm:$0xff]
    %v108 = vld [vmem:[%s1 + $0x1c8] sm:$0xff]
    %v109 = vld [vmem:[%s1 + $0x1d0] sm:$0xff]
    %v110 = vld [vmem:[%s1 + $0x1d8] sm:$0xff]
    %v111 = vld [vmem:[%s1 + $0x1e0] sm:$0xff]
    %v112 = vld [vmem:[%s1 + $0x1e8] sm:$0xff]
    %v113 = vld [vmem:[%s1 + $0x1f0] sm:$0xff]
    %v114 = vld [vmem:[%s1 + $0x1f8] sm:$0xff]
    %115 = vmatprep.subr.mxu0 0.0
    %116 = vmatpush1.msra.mxu0 %v51
    %117 = vmatprep.subr.mxu0 0.0
    %118 = vmatpush1.msra.mxu0 %v52
    %119 = vmatprep.subr.mxu0 0.0
    %120 = vmatpush1.msra.mxu0 %v53
    %121 = vmatprep.subr.mxu0 0.0
    %122 = vmatpush1.msra.mxu0 %v54
    %123 = vmatprep.subr.mxu0 0.0
    %124 = vmatpush1.msra.mxu0 %v55
    %125 = vmatprep.subr.mxu0 0.0
    %126 = vmatpush1.msra.mxu0 %v56
    %127 = vmatprep.subr.mxu0 0.0
    %128 = vmatpush1.msra.mxu0 %v57
    %129 = vmatprep.subr.mxu0 0.0
    %130 = vmatpush1.msra.mxu0 %v58
    %131 = vmatprep.subr.mxu0 0.0
    %132 = vmatpush1.msra.mxu0 %v59
    %133 = vmatprep.subr.mxu0 0.0
    %134 = vmatpush1.msra.mxu0 %v60
    %135 = vmatprep.subr.mxu0 0.0
    %136 = vmatpush1.msra.mxu0 %v61
    %137 = vmatprep.subr.mxu0 0.0
    %138 = vmatpush1.msra.mxu0 %v62
    %139 = vmatprep.subr.mxu0 0.0
    %140 = vmatpush1.msra.mxu0 %v63
    %141 = vmatprep.subr.mxu0 0.0
    %142 = vmatpush1.msra.mxu0 %v64
    %143 = vmatprep.subr.mxu0 0.0
    %144 = vmatpush1.msra.mxu0 %v65
    %145 = vmatprep.subr.mxu0 0.0
    %146 = vmatpush1.msra.mxu0 %v66
    %147 = vmatprep.subr.mxu0 0.0
    %148 = vmatpush1.msra.mxu0 %v67
    %149 = vmatprep.subr.mxu0 0.0
    %150 = vmatpush1.msra.mxu0 %v68
    %151 = vmatprep.subr.mxu0 0.0
    %152 = vmatpush1.msra.mxu0 %v69
    %153 = vmatprep.subr.mxu0 0.0
    %154 = vmatpush1.msra.mxu0 %v70
    %155 = vmatprep.subr.mxu0 0.0
    %156 = vmatpush1.msra.mxu0 %v71
    %157 = vmatprep.subr.mxu0 0.0
    %158 = vmatpush1.msra.mxu0 %v72
    %159 = vmatprep.subr.mxu0 0.0
    %160 = vmatpush1.msra.mxu0 %v73
    %161 = vmatprep.subr.mxu0 0.0
    %162 = vmatpush1.msra.mxu0 %v74
    %163 = vmatprep.subr.mxu0 0.0
    %164 = vmatpush1.msra.mxu0 %v75
    %165 = vmatprep.subr.mxu0 0.0
    %166 = vmatpush1.msra.mxu0 %v76
    %167 = vmatprep.subr.mxu0 0.0
    %168 = vmatpush1.msra.mxu0 %v77
    %169 = vmatprep.subr.mxu0 0.0
    %170 = vmatpush1.msra.mxu0 %v78
    %171 = vmatprep.subr.mxu0 0.0
    %172 = vmatpush1.msra.mxu0 %v79
    %173 = vmatprep.subr.mxu0 0.0
    %174 = vmatpush1.msra.mxu0 %v80
    %175 = vmatprep.subr.mxu0 0.0
    %176 = vmatpush1.msra.mxu0 %v81
    %177 = vmatprep.subr.mxu0 0.0
    %178 = vmatpush1.msra.mxu0 %v82
    %179 = vmatprep.mubr.f32.mxu0 %v20
    %180 = vmatmul.mubr.f32.gmra.mrb[0].mxu0 %v19
    %v181 = vpop.f32.mrb[0].mxu0
    %v182 = vadd.f32 0.0, %v181
    %v183 = vpop.f32.mrb[0].mxu0
    %184 = vmatprep.mubr.f32.mxu0 %v24
    %185 = vmatmul.mubr.f32.gmra.mrb[0].mxu0 %v23
    %v186 = vpop.f32.mrb[0].mxu0
    %v187 = vadd.f32 0.0, %v186
    %v188 = vpop.f32.mrb[0].mxu0
    %189 = vmatprep.mubr.f32.mxu0 %v28
    %190 = vmatmul.mubr.f32.gmra.mrb[0].mxu0 %v27
    %v191 = vpop.f32.mrb[0].mxu0
    %v192 = vadd.f32 0.0, %v191
    %v193 = vpop.f32.mrb[0].mxu0
    %194 = vmatprep.mubr.f32.mxu0 %v32
    %195 = vmatmul.mubr.f32.gmra.mrb[0].mxu0 %v31
    %v196 = vpop.f32.mrb[0].mxu0
    %v197 = vadd.f32 0.0, %v196
    %v198 = vpop.f32.mrb[0].mxu0
    %199 = vmatprep.mubr.f32.mxu0 %v36
    %200 = vmatmul.mubr.f32.gmra.mrb[0].mxu0 %v35
    %v201 = vpop.f32.mrb[0].mxu0
    %v202 = vadd.f32 0.0, %v201
    %v203 = vpop.f32.mrb[0].mxu0
    %204 = vmatprep.mubr.f32.mxu0 %v40
    %205 = vmatmul.mubr.f32.gmra.mrb[0].mxu0 %v39
    %v206 = vpop.f32.mrb[0].mxu0
    %v207 = vadd.f32 0.0, %v206
    %v208 = vpop.f32.mrb[0].mxu0
    %209 = vmatprep.mubr.f32.mxu0 %v44
    %210 = vmatmul.mubr.f32.gmra.mrb[0].mxu0 %v43
    %v211 = vpop.f32.mrb[0].mxu0
    %v212 = vadd.f32 0.0, %v211
    %v213 = vpop.f32.mrb[0].mxu0
    %214 = vmatprep.mubr.f32.mxu0 %v48
    %215 = vmatmul.mubr.f32.gmra.mrb[0].mxu0 %v47
    %v216 = vpop.f32.mrb[0].mxu0
    %v217 = vadd.f32 0.0, %v216
    %v218 = vpop.f32.mrb[0].mxu0
    %219 = vdwg.mxu0
    %220 = vmatprep.subr.mxu0 0.0
    %221 = vmatpush1.msra.mxu0 %v83
    %222 = vmatprep.subr.mxu0 0.0
    %223 = vmatpush1.msra.mxu0 %v84
    %224 = vmatprep.subr.mxu0 0.0
    %225 = vmatpush1.msra.mxu0 %v85
    %226 = vmatprep.subr.mxu0 0.0
    %227 = vmatpush1.msra.mxu0 %v86
    %228 = vmatprep.subr.mxu0 0.0
    %229 = vmatpush1.msra.mxu0 %v87
    %230 = vmatprep.subr.mxu0 0.0
    %231 = vmatpush1.msra.mxu0 %v88
    %232 = vmatprep.subr.mxu0 0.0
    %233 = vmatpush1.msra.mxu0 %v89
    %234 = vmatprep.subr.mxu0 0.0
    %235 = vmatpush1.msra.mxu0 %v90
    %236 = vmatprep.subr.mxu0 0.0
    %237 = vmatpush1.msra.mxu0 %v91
    %238 = vmatprep.subr.mxu0 0.0
    %239 = vmatpush1.msra.mxu0 %v92
    %240 = vmatprep.subr.mxu0 0.0
    %241 = vmatpush1.msra.mxu0 %v93
    %242 = vmatprep.subr.mxu0 0.0
    %243 = vmatpush1.msra.mxu0 %v94
    %244 = vmatprep.subr.mxu0 0.0
    %245 = vmatpush1.msra.mxu0 %v95
    %246 = vmatprep.subr.mxu0 0.0
    %247 = vmatpush1.msra.mxu0 %v96
    %248 = vmatprep.subr.mxu0 0.0
    %249 = vmatpush1.msra.mxu0 %v97
    %250 = vmatprep.subr.mxu0 0.0
    %251 = vmatpush1.msra.mxu0 %v98
    %252 = vmatprep.subr.mxu0 0.0
    %253 = vmatpush1.msra.mxu0 %v99
    %254 = vmatprep.subr.mxu0 0.0
    %255 = vmatpush1.msra.mxu0 %v100
    %256 = vmatprep.subr.mxu0 0.0
    %257 = vmatpush1.msra.mxu0 %v101
    %258 = vmatprep.subr.mxu0 0.0
    %259 = vmatpush1.msra.mxu0 %v102
    %260 = vmatprep.subr.mxu0 0.0
    %261 = vmatpush1.msra.mxu0 %v103
    %262 = vmatprep.subr.mxu0 0.0
    %263 = vmatpush1.msra.mxu0 %v104
    %264 = vmatprep.subr.mxu0 0.0
    %265 = vmatpush1.msra.mxu0 %v105
    %266 = vmatprep.subr.mxu0 0.0
    %267 = vmatpush1.msra.mxu0 %v106
    %268 = vmatprep.subr.mxu0 0.0
    %269 = vmatpush1.msra.mxu0 %v107
    %270 = vmatprep.subr.mxu0 0.0
    %271 = vmatpush1.msra.mxu0 %v108
    %272 = vmatprep.subr.mxu0 0.0
    %273 = vmatpush1.msra.mxu0 %v109
    %274 = vmatprep.subr.mxu0 0.0
    %275 = vmatpush1.msra.mxu0 %v110
    %276 = vmatprep.subr.mxu0 0.0
    %277 = vmatpush1.msra.mxu0 %v111
    %278 = vmatprep.subr.mxu0 0.0
    %279 = vmatpush1.msra.mxu0 %v112
    %280 = vmatprep.subr.mxu0 0.0
    %281 = vmatpush1.msra.mxu0 %v113
    %282 = vmatprep.subr.mxu0 0.0
    %283 = vmatpush1.msra.mxu0 %v114
    %284 = vmatprep.mubr.f32.mxu0 %v22
    %285 = vmatmul.mubr.f32.gmra.mrb[0].mxu0 %v21
    %v286 = vpop.f32.mrb[0].mxu0
    %v287 = vadd.f32 %v182, %v286
    %v288 = vpop.f32.mrb[0].mxu0
    %289 = vmatprep.mubr.f32.mxu0 %v26
    %290 = vmatmul.mubr.f32.gmra.mrb[0].mxu0 %v25
    %v291 = vpop.f32.mrb[0].mxu0
    %v292 = vadd.f32 %v187, %v291
    %v293 = vpop.f32.mrb[0].mxu0
    %294 = vmatprep.mubr.f32.mxu0 %v30
    %295 = vmatmul.mubr.f32.gmra.mrb[0].mxu0 %v29
    %v296 = vpop.f32.mrb[0].mxu0
    %v297 = vadd.f32 %v192, %v296
    %v298 = vpop.f32.mrb[0].mxu0
    %299 = vmatprep.mubr.f32.mxu0 %v34
    %300 = vmatmul.mubr.f32.gmra.mrb[0].mxu0 %v33
    %v301 = vpop.f32.mrb[0].mxu0
    %v302 = vadd.f32 %v197, %v301
    %v303 = vpop.f32.mrb[0].mxu0
    %304 = vmatprep.mubr.f32.mxu0 %v38
    %305 = vmatmul.mubr.f32.gmra.mrb[0].mxu0 %v37
    %v306 = vpop.f32.mrb[0].mxu0
    %v307 = vadd.f32 %v202, %v306
    %v308 = vpop.f32.mrb[0].mxu0
    %309 = vmatprep.mubr.f32.mxu0 %v42
    %310 = vmatmul.mubr.f32.gmra.mrb[0].mxu0 %v41
    %v311 = vpop.f32.mrb[0].mxu0
    %v312 = vadd.f32 %v207, %v311
    %v313 = vpop.f32.mrb[0].mxu0
    %314 = vmatprep.mubr.f32.mxu0 %v46
    %315 = vmatmul.mubr.f32.gmra.mrb[0].mxu0 %v45
    %v316 = vpop.f32.mrb[0].mxu0
    %v317 = vadd.f32 %v212, %v316
    %v318 = vpop.f32.mrb[0].mxu0
    %319 = vmatprep.mubr.f32.mxu0 %v50
    %320 = vmatmul.mubr.f32.gmra.mrb[0].mxu0 %v49
    %v321 = vpop.f32.mrb[0].mxu0
    %v322 = vadd.f32 %v217, %v321
    %v323 = vpop.f32.mrb[0].mxu0
    %324 = vdwg.mxu0
    %v325 = vld [vmem:[%s2] sm:$0xff]
    %v326 = vld [vmem:[%s2 + $0x8] sm:$0xff]
    %v327 = vld [vmem:[%s2 + $0x10] sm:$0xff]
    %v328 = vld [vmem:[%s2 + $0x18] sm:$0xff]
    %v329 = vld [vmem:[%s2 + $0x20] sm:$0xff]
    %v330 = vld [vmem:[%s2 + $0x28] sm:$0xff]
    %v331 = vld [vmem:[%s2 + $0x30] sm:$0xff]
    %v332 = vld [vmem:[%s2 + $0x38] sm:$0xff]
    %v333 = vld [vmem:[%s2 + $0x40] sm:$0xff]
    %v334 = vld [vmem:[%s2 + $0x48] sm:$0xff]
    %v335 = vld [vmem:[%s2 + $0x50] sm:$0xff]
    %v336 = vld [vmem:[%s2 + $0x58] sm:$0xff]
    %v337 = vld [vmem:[%s2 + $0x60] sm:$0xff]
    %v338 = vld [vmem:[%s2 + $0x68] sm:$0xff]
    %v339 = vld [vmem:[%s2 + $0x70] sm:$0xff]
    %v340 = vld [vmem:[%s2 + $0x78] sm:$0xff]
    %v341 = vld [vmem:[%s2 + $0x80] sm:$0xff]
    %v342 = vld [vmem:[%s2 + $0x88] sm:$0xff]
    %v343 = vld [vmem:[%s2 + $0x90] sm:$0xff]
    %v344 = vld [vmem:[%s2 + $0x98] sm:$0xff]
    %v345 = vld [vmem:[%s2 + $0xa0] sm:$0xff]
    %v346 = vld [vmem:[%s2 + $0xa8] sm:$0xff]
    %v347 = vld [vmem:[%s2 + $0xb0] sm:$0xff]
    %v348 = vld [vmem:[%s2 + $0xb8] sm:$0xff]
    %v349 = vld [vmem:[%s2 + $0xc0] sm:$0xff]
    %v350 = vld [vmem:[%s2 + $0xc8] sm:$0xff]
    %v351 = vld [vmem:[%s2 + $0xd0] sm:$0xff]
    %v352 = vld [vmem:[%s2 + $0xd8] sm:$0xff]
    %v353 = vld [vmem:[%s2 + $0xe0] sm:$0xff]
    %v354 = vld [vmem:[%s2 + $0xe8] sm:$0xff]
    %v355 = vld [vmem:[%s2 + $0xf0] sm:$0xff]
    %v356 = vld [vmem:[%s2 + $0xf8] sm:$0xff]
    %s357 = sld [smem:[#allocation2]]
    %v358 = vstv %s357
    %vm359 = vcmask 523264
    %v361 = vsel %vm359, %v325, 0
    %v364 = vsel %vm359, %v326, 0
    %v367 = vsel %vm359, %v327, 0
    %v370 = vsel %vm359, %v328, 0
    %v373 = vsel %vm359, %v329, 0
    %v376 = vsel %vm359, %v330, 0
    %v379 = vsel %vm359, %v331, 0
    %v382 = vsel %vm359, %v332, 0
    %v385 = vsel %vm359, %v333, 0
    %v388 = vsel %vm359, %v334, 0
    %v391 = vsel %vm359, %v335, 0
    %v394 = vsel %vm359, %v336, 0
    %v397 = vsel %vm359, %v337, 0
    %v400 = vsel %vm359, %v338, 0
    %v403 = vsel %vm359, %v339, 0
    %v406 = vsel %vm359, %v340, 0
    %v409 = vsel %vm359, %v341, 0
    %v412 = vsel %vm359, %v342, 0
    %v415 = vsel %vm359, %v343, 0
    %v418 = vsel %vm359, %v344, 0
    %v421 = vsel %vm359, %v345, 0
    %v424 = vsel %vm359, %v346, 0
    %v427 = vsel %vm359, %v347, 0
    %v430 = vsel %vm359, %v348, 0
    %v433 = vsel %vm359, %v349, 0
    %v436 = vsel %vm359, %v350, 0
    %v439 = vsel %vm359, %v351, 0
    %v442 = vsel %vm359, %v352, 0
    %v445 = vsel %vm359, %v353, 0
    %v448 = vsel %vm359, %v354, 0
    %v451 = vsel %vm359, %v355, 0
    %v454 = vsel %vm359, %v356, 0
    %456 = vmatprep.subr.mxu0 0.0
    %457 = vmatpush1.msra.mxu0 %v287
    %458 = vmatprep.subr.mxu0 0.0
    %459 = vmatpush1.msra.mxu0 %v292
    %460 = vmatprep.subr.mxu0 0.0
    %461 = vmatpush1.msra.mxu0 %v297
    %462 = vmatprep.subr.mxu0 0.0
    %463 = vmatpush1.msra.mxu0 %v302
    %464 = vmatprep.subr.mxu0 0.0
    %465 = vmatpush1.msra.mxu0 %v307
    %466 = vmatprep.subr.mxu0 0.0
    %467 = vmatpush1.msra.mxu0 %v312
    %468 = vmatprep.subr.mxu0 0.0
    %469 = vmatpush1.msra.mxu0 %v317
    %470 = vmatprep.subr.mxu0 0.0
    %471 = vmatpush1.msra.mxu0 %v322
    %472 = vmatprep.subr.mxu0 0.0
    %473 = vmatpush1.msra.mxu0 0.0
    %474 = vmatprep.subr.mxu0 0.0
    %475 = vmatpush1.msra.mxu0 0.0
    %476 = vmatprep.subr.mxu0 0.0
    %477 = vmatpush1.msra.mxu0 0.0
    %478 = vmatprep.subr.mxu0 0.0
    %479 = vmatpush1.msra.mxu0 0.0
    %480 = vmatprep.subr.mxu0 0.0
    %481 = vmatpush1.msra.mxu0 0.0
    %482 = vmatprep.subr.mxu0 0.0
    %483 = vmatpush1.msra.mxu0 0.0
    %484 = vmatprep.subr.mxu0 0.0
    %485 = vmatpush1.msra.mxu0 0.0
    %486 = vmatprep.subr.mxu0 0.0
    %487 = vmatpush1.msra.mxu0 0.0
    %488 = vmatprep.subr.mxu0 0.0
    %489 = vmatpush1.msra.mxu0 0.0
    %490 = vmatprep.subr.mxu0 0.0
    %491 = vmatpush1.msra.mxu0 0.0
    %492 = vmatprep.subr.mxu0 0.0
    %493 = vmatpush1.msra.mxu0 0.0
    %494 = vmatprep.subr.mxu0 0.0
    %495 = vmatpush1.msra.mxu0 0.0
    %496 = vmatprep.subr.mxu0 0.0
    %497 = vmatpush1.msra.mxu0 0.0
    %498 = vmatprep.subr.mxu0 0.0
    %499 = vmatpush1.msra.mxu0 0.0
    %500 = vmatprep.subr.mxu0 0.0
    %501 = vmatpush1.msra.mxu0 0.0
    %502 = vmatprep.subr.mxu0 0.0
    %503 = vmatpush1.msra.mxu0 0.0
    %504 = vmatprep.subr.mxu0 0.0
    %505 = vmatpush1.msra.mxu0 0.0
    %506 = vmatprep.subr.mxu0 0.0
    %507 = vmatpush1.msra.mxu0 0.0
    %508 = vmatprep.subr.mxu0 0.0
    %509 = vmatpush1.msra.mxu0 0.0
    %510 = vmatprep.subr.mxu0 0.0
    %511 = vmatpush1.msra.mxu0 0.0
    %512 = vmatprep.subr.mxu0 0.0
    %513 = vmatpush1.msra.mxu0 0.0
    %514 = vmatprep.subr.mxu0 0.0
    %515 = vmatpush1.msra.mxu0 0.0
    %516 = vmatprep.subr.mxu0 0.0
    %517 = vmatpush1.msra.mxu0 0.0
    %518 = vmatprep.subr.mxu0 0.0
    %519 = vmatpush1.msra.mxu0 0.0
    %520 = vmatprep.mubr.f32.mxu0 0.0
    %521 = vmatmul.mubr.f32.gmra.mrb[0].mxu0 %v361
    %v522 = vpop.f32.mrb[0].mxu0
    %v523 = vadd.f32 %v358, %v522
    %v524 = vpop.f32.mrb[0].mxu0
    %525 = vmatprep.mubr.f32.mxu0 0.0
    %526 = vmatmul.mubr.f32.gmra.mrb[0].mxu0 %v364
    %v527 = vpop.f32.mrb[0].mxu0
    %v528 = vadd.f32 %v358, %v527
    %v529 = vpop.f32.mrb[0].mxu0
    %530 = vmatprep.mubr.f32.mxu0 0.0
    %531 = vmatmul.mubr.f32.gmra.mrb[0].mxu0 %v367
    %v532 = vpop.f32.mrb[0].mxu0
    %v533 = vadd.f32 %v358, %v532
    %v534 = vpop.f32.mrb[0].mxu0
    %535 = vmatprep.mubr.f32.mxu0 0.0
    %536 = vmatmul.mubr.f32.gmra.mrb[0].mxu0 %v370
    %v537 = vpop.f32.mrb[0].mxu0
    %v538 = vadd.f32 %v358, %v537
    %v539 = vpop.f32.mrb[0].mxu0
    %540 = vmatprep.mubr.f32.mxu0 0.0
    %541 = vmatmul.mubr.f32.gmra.mrb[0].mxu0 %v373
    %v542 = vpop.f32.mrb[0].mxu0
    %v543 = vadd.f32 %v358, %v542
    %v544 = vpop.f32.mrb[0].mxu0
    %545 = vmatprep.mubr.f32.mxu0 0.0
    %546 = vmatmul.mubr.f32.gmra.mrb[0].mxu0 %v376
    %v547 = vpop.f32.mrb[0].mxu0
    %v548 = vadd.f32 %v358, %v547
    %v549 = vpop.f32.mrb[0].mxu0
    %550 = vmatprep.mubr.f32.mxu0 0.0
    %551 = vmatmul.mubr.f32.gmra.mrb[0].mxu0 %v379
    %v552 = vpop.f32.mrb[0].mxu0
    %v553 = vadd.f32 %v358, %v552
    %v554 = vpop.f32.mrb[0].mxu0
    %555 = vmatprep.mubr.f32.mxu0 0.0
    %556 = vmatmul.mubr.f32.gmra.mrb[0].mxu0 %v382
    %v557 = vpop.f32.mrb[0].mxu0
    %v558 = vadd.f32 %v358, %v557
    %v559 = vpop.f32.mrb[0].mxu0
    %560 = vmatprep.mubr.f32.mxu0 0.0
    %561 = vmatmul.mubr.f32.gmra.mrb[0].mxu0 %v385
    %v562 = vpop.f32.mrb[0].mxu0
    %v563 = vadd.f32 %v358, %v562
    %v564 = vpop.f32.mrb[0].mxu0
    %565 = vmatprep.mubr.f32.mxu0 0.0
    %566 = vmatmul.mubr.f32.gmra.mrb[0].mxu0 %v388
    %v567 = vpop.f32.mrb[0].mxu0
    %v568 = vadd.f32 %v358, %v567
    %v569 = vpop.f32.mrb[0].mxu0
    %570 = vmatprep.mubr.f32.mxu0 0.0
    %571 = vmatmul.mubr.f32.gmra.mrb[0].mxu0 %v391
    %v572 = vpop.f32.mrb[0].mxu0
    %v573 = vadd.f32 %v358, %v572
    %v574 = vpop.f32.mrb[0].mxu0
    %575 = vmatprep.mubr.f32.mxu0 0.0
    %576 = vmatmul.mubr.f32.gmra.mrb[0].mxu0 %v394
    %v577 = vpop.f32.mrb[0].mxu0
    %v578 = vadd.f32 %v358, %v577
    %v579 = vpop.f32.mrb[0].mxu0
    %580 = vmatprep.mubr.f32.mxu0 0.0
    %581 = vmatmul.mubr.f32.gmra.mrb[0].mxu0 %v397
    %v582 = vpop.f32.mrb[0].mxu0
    %v583 = vadd.f32 %v358, %v582
    %v584 = vpop.f32.mrb[0].mxu0
    %585 = vmatprep.mubr.f32.mxu0 0.0
    %586 = vmatmul.mubr.f32.gmra.mrb[0].mxu0 %v400
    %v587 = vpop.f32.mrb[0].mxu0
    %v588 = vadd.f32 %v358, %v587
    %v589 = vpop.f32.mrb[0].mxu0
    %590 = vmatprep.mubr.f32.mxu0 0.0
    %591 = vmatmul.mubr.f32.gmra.mrb[0].mxu0 %v403
    %v592 = vpop.f32.mrb[0].mxu0
    %v593 = vadd.f32 %v358, %v592
    %v594 = vpop.f32.mrb[0].mxu0
    %595 = vmatprep.mubr.f32.mxu0 0.0
    %596 = vmatmul.mubr.f32.gmra.mrb[0].mxu0 %v406
    %v597 = vpop.f32.mrb[0].mxu0
    %v598 = vadd.f32 %v358, %v597
    %v599 = vpop.f32.mrb[0].mxu0
    %600 = vmatprep.mubr.f32.mxu0 0.0
    %601 = vmatmul.mubr.f32.gmra.mrb[0].mxu0 %v409
    %v602 = vpop.f32.mrb[0].mxu0
    %v603 = vadd.f32 %v358, %v602
    %v604 = vpop.f32.mrb[0].mxu0
    %605 = vmatprep.mubr.f32.mxu0 0.0
    %606 = vmatmul.mubr.f32.gmra.mrb[0].mxu0 %v412
    %v607 = vpop.f32.mrb[0].mxu0
    %v608 = vadd.f32 %v358, %v607
    %v609 = vpop.f32.mrb[0].mxu0
    %610 = vmatprep.mubr.f32.mxu0 0.0
    %611 = vmatmul.mubr.f32.gmra.mrb[0].mxu0 %v415
    %v612 = vpop.f32.mrb[0].mxu0
    %v613 = vadd.f32 %v358, %v612
    %v614 = vpop.f32.mrb[0].mxu0
    %615 = vmatprep.mubr.f32.mxu0 0.0
    %616 = vmatmul.mubr.f32.gmra.mrb[0].mxu0 %v418
    %v617 = vpop.f32.mrb[0].mxu0
    %v618 = vadd.f32 %v358, %v617
    %v619 = vpop.f32.mrb[0].mxu0
    %620 = vmatprep.mubr.f32.mxu0 0.0
    %621 = vmatmul.mubr.f32.gmra.mrb[0].mxu0 %v421
    %v622 = vpop.f32.mrb[0].mxu0
    %v623 = vadd.f32 %v358, %v622
    %v624 = vpop.f32.mrb[0].mxu0
    %625 = vmatprep.mubr.f32.mxu0 0.0
    %626 = vmatmul.mubr.f32.gmra.mrb[0].mxu0 %v424
    %v627 = vpop.f32.mrb[0].mxu0
    %v628 = vadd.f32 %v358, %v627
    %v629 = vpop.f32.mrb[0].mxu0
    %630 = vmatprep.mubr.f32.mxu0 0.0
    %631 = vmatmul.mubr.f32.gmra.mrb[0].mxu0 %v427
    %v632 = vpop.f32.mrb[0].mxu0
    %v633 = vadd.f32 %v358, %v632
    %v634 = vpop.f32.mrb[0].mxu0
    %635 = vmatprep.mubr.f32.mxu0 0.0
    %636 = vmatmul.mubr.f32.gmra.mrb[0].mxu0 %v430
    %v637 = vpop.f32.mrb[0].mxu0
    %v638 = vadd.f32 %v358, %v637
    %v639 = vpop.f32.mrb[0].mxu0
    %640 = vmatprep.mubr.f32.mxu0 0.0
    %641 = vmatmul.mubr.f32.gmra.mrb[0].mxu0 %v433
    %v642 = vpop.f32.mrb[0].mxu0
    %v643 = vadd.f32 %v358, %v642
    %v644 = vpop.f32.mrb[0].mxu0
    %645 = vmatprep.mubr.f32.mxu0 0.0
    %646 = vmatmul.mubr.f32.gmra.mrb[0].mxu0 %v436
    %v647 = vpop.f32.mrb[0].mxu0
    %v648 = vadd.f32 %v358, %v647
    %v649 = vpop.f32.mrb[0].mxu0
    %650 = vmatprep.mubr.f32.mxu0 0.0
    %651 = vmatmul.mubr.f32.gmra.mrb[0].mxu0 %v439
    %v652 = vpop.f32.mrb[0].mxu0
    %v653 = vadd.f32 %v358, %v652
    %v654 = vpop.f32.mrb[0].mxu0
    %655 = vmatprep.mubr.f32.mxu0 0.0
    %656 = vmatmul.mubr.f32.gmra.mrb[0].mxu0 %v442
    %v657 = vpop.f32.mrb[0].mxu0
    %v658 = vadd.f32 %v358, %v657
    %v659 = vpop.f32.mrb[0].mxu0
    %660 = vmatprep.mubr.f32.mxu0 0.0
    %661 = vmatmul.mubr.f32.gmra.mrb[0].mxu0 %v445
    %v662 = vpop.f32.mrb[0].mxu0
    %v663 = vadd.f32 %v358, %v662
    %v664 = vpop.f32.mrb[0].mxu0
    %665 = vmatprep.mubr.f32.mxu0 0.0
    %666 = vmatmul.mubr.f32.gmra.mrb[0].mxu0 %v448
    %v667 = vpop.f32.mrb[0].mxu0
    %v668 = vadd.f32 %v358, %v667
    %v669 = vpop.f32.mrb[0].mxu0
    %670 = vmatprep.mubr.f32.mxu0 0.0
    %671 = vmatmul.mubr.f32.gmra.mrb[0].mxu0 %v451
    %v672 = vpop.f32.mrb[0].mxu0
    %v673 = vadd.f32 %v358, %v672
    %v674 = vpop.f32.mrb[0].mxu0
    %675 = vmatprep.mubr.f32.mxu0 0.0
    %676 = vmatmul.mubr.f32.gmra.mrb[0].mxu0 %v454
    %v677 = vpop.f32.mrb[0].mxu0
    %v678 = vadd.f32 %v358, %v677
    %v679 = vpop.f32.mrb[0].mxu0
    %680 = vdwg.mxu0
    %681 = vst.msk [vmem:[#allocation3] sm:$0xff] %vm359, %v523
    %682 = vst.msk [vmem:[#allocation3 + $0x8] sm:$0xff] %vm359, %v528
    %683 = vst.msk [vmem:[#allocation3 + $0x10] sm:$0xff] %vm359, %v533
    %684 = vst.msk [vmem:[#allocation3 + $0x18] sm:$0xff] %vm359, %v538
    %685 = vst.msk [vmem:[#allocation3 + $0x20] sm:$0xff] %vm359, %v543
    %686 = vst.msk [vmem:[#allocation3 + $0x28] sm:$0xff] %vm359, %v548
    %687 = vst.msk [vmem:[#allocation3 + $0x30] sm:$0xff] %vm359, %v553
    %688 = vst.msk [vmem:[#allocation3 + $0x38] sm:$0xff] %vm359, %v558
    %689 = vst.msk [vmem:[#allocation3 + $0x40] sm:$0xff] %vm359, %v563
    %690 = vst.msk [vmem:[#allocation3 + $0x48] sm:$0xff] %vm359, %v568
    %691 = vst.msk [vmem:[#allocation3 + $0x50] sm:$0xff] %vm359, %v573
    %692 = vst.msk [vmem:[#allocation3 + $0x58] sm:$0xff] %vm359, %v578
    %693 = vst.msk [vmem:[#allocation3 + $0x60] sm:$0xff] %vm359, %v583
    %694 = vst.msk [vmem:[#allocation3 + $0x68] sm:$0xff] %vm359, %v588
    %695 = vst.msk [vmem:[#allocation3 + $0x70] sm:$0xff] %vm359, %v593
    %696 = vst.msk [vmem:[#allocation3 + $0x78] sm:$0xff] %vm359, %v598
    %697 = vst.msk [vmem:[#allocation3 + $0x80] sm:$0xff] %vm359, %v603
    %698 = vst.msk [vmem:[#allocation3 + $0x88] sm:$0xff] %vm359, %v608
    %699 = vst.msk [vmem:[#allocation3 + $0x90] sm:$0xff] %vm359, %v613
    %700 = vst.msk [vmem:[#allocation3 + $0x98] sm:$0xff] %vm359, %v618
    %701 = vst.msk [vmem:[#allocation3 + $0xa0] sm:$0xff] %vm359, %v623
    %702 = vst.msk [vmem:[#allocation3 + $0xa8] sm:$0xff] %vm359, %v628
    %703 = vst.msk [vmem:[#allocation3 + $0xb0] sm:$0xff] %vm359, %v633
    %704 = vst.msk [vmem:[#allocation3 + $0xb8] sm:$0xff] %vm359, %v638
    %705 = vst.msk [vmem:[#allocation3 + $0xc0] sm:$0xff] %vm359, %v643
    %706 = vst.msk [vmem:[#allocation3 + $0xc8] sm:$0xff] %vm359, %v648
    %707 = vst.msk [vmem:[#allocation3 + $0xd0] sm:$0xff] %vm359, %v653
    %708 = vst.msk [vmem:[#allocation3 + $0xd8] sm:$0xff] %vm359, %v658
    %709 = vst.msk [vmem:[#allocation3 + $0xe0] sm:$0xff] %vm359, %v663
    %710 = vst.msk [vmem:[#allocation3 + $0xe8] sm:$0xff] %vm359, %v668
    %711 = vst.msk [vmem:[#allocation3 + $0xf0] sm:$0xff] %vm359, %v673
    %712 = vst.msk [vmem:[#allocation3 + $0xf8] sm:$0xff] %vm359, %v678
    // Predicated region
    $region18: #{attention_decoder_mask_head.1} parent=1 // pred_check
      _
    $region19: #{attention_decoder_mask_head.1} parent=1 // pred_check_branch
      %714 = sbr.rel (0) target = $region21
    $region20: #{attention_decoder_mask_head.1} parent=1 // pred_region
      %s716 = ssub.s32 4096, 4096
      %717 = vsyncadd [#allocation4], %s716
      %s718 = sshll.u32 [#allocation3], 4
      %s719 = int_to_ptr.vmem [resolvable:$true] %s718
      %724 = dma.vmem_to_hbm [thread:$0]  %s719, 4096, %s4, [#allocation4], 128, 128, 8
    $region21: #{attention_decoder_mask_head.1} parent=1 // pred_fallthru
      _
    // Predicated region
    $region22: #{attention_decoder_mask_head.1} parent=1 // pred_check
      _
    $region23: #{attention_decoder_mask_head.1} parent=1 // pred_check_branch
      %726 = sbr.rel (0) target = $region25
    $region24: #{attention_decoder_mask_head.1} parent=1 // pred_region
      %727 = dma.done [#allocation4], 4096
    $region25: #{attention_decoder_mask_head.1} parent=1 // pred_fallthru
      _
    %728 = vsyncpa [#allocation4], 1

</llo_original>
